<compile_context>
chip_gen: v5e
topology: v5e:2x2
jax: 0.10.0
libtpu: 0.0.40
codegen_flags: <defaults>
</compile_context>

<pallas_src>
import jax
import jax.numpy as jnp
from jax.experimental import pallas as pl
from jax.experimental.pallas import tpu as pltpu


def _prepend_kernel(cls_ref, x_ref, o_ref):
    # cls_ref: (1, 1, E)     class token, VMEM-resident for the whole kernel
    # x_ref:   (BB, N, E)    input block  (auto-DMA HBM->VMEM, double-buffered)
    # o_ref:   (BB, N+1, E)  output block (auto-DMA VMEM->HBM, double-buffered)
    bb = o_ref.shape[0]
    e = o_ref.shape[2]
    # Row 0 of every batch element in this block: the (broadcast) class token.
    o_ref[:, 0:1, :] = jnp.broadcast_to(cls_ref[...], (bb, 1, e))
    # Rows 1..N: the input tokens (sublane-shifted store; hidden under the DMAs).
    o_ref[:, 1:, :] = x_ref[...]


def _pick_block_batch(B, N, E, itemsize, *, max_block_batch=32,
                      vmem_budget_bytes=24 * 1024 * 1024):
    """Largest divisor of B (capped) whose double-buffered blocks fit the VMEM budget."""
    per_batch_bytes = (2 * N + 1) * E * itemsize          # in (N,E) + out (N+1,E)
    cap = min(B, max_block_batch, max(1, vmem_budget_bytes // (2 * per_batch_bytes)))
    for cand in range(cap, 0, -1):
        if B % cand == 0:
            return cand
    return 1


def class_token_prepender(x: jax.Array, class_token_vector: jax.Array) -> jax.Array:
    """x: [B, N, E], class_token_vector: [1, 1, E] -> [B, N+1, E]."""
    B, N, E = x.shape
    # Match activation dtype (the learnable param may be f32 while x is bf16).
    cls3d = class_token_vector.reshape(1, 1, E).astype(x.dtype)

    itemsize = jnp.dtype(x.dtype).itemsize
    bb = _pick_block_batch(B, N, E, itemsize)
    grid = (B // bb,)

    bytes_accessed = (B * N * E + B * (N + 1) * E + E) * itemsize

    out = pl.pallas_call(
        _prepend_kernel,
        out_shape=jax.ShapeDtypeStruct((B, N + 1, E), x.dtype),
        grid_spec=pltpu.PrefetchScalarGridSpec(
            num_scalar_prefetch=0,
            grid=grid,
            in_specs=[
                # Whole (1, 1, E) class token resident in VMEM for the entire
                # kernel: one tiny DMA total, no per-step re-copy.
                pl.BlockSpec(memory_space=pltpu.MemorySpace.VMEM),
                # BB batches worth of tokens per step, full (N, E) in the last
                # two dims (lane-dense), double-buffered by the pipeline.
                pl.BlockSpec((bb, N, E), lambda i: (i, 0, 0)),
            ],
            out_specs=pl.BlockSpec((bb, N + 1, E), lambda i: (i, 0, 0)),
        ),
        compiler_params=pltpu.CompilerParams(
            dimension_semantics=("parallel",),
        ),
        cost_estimate=pl.CostEstimate(
            flops=0, transcendentals=0, bytes_accessed=bytes_accessed
        ),
    )(cls3d, x)
    return out


if __name__ == "__main__":
    key = jax.random.PRNGKey(0)
    k_cls, k_x = jax.random.split(key)

    batch_size = 2
    nbr_token = 8
    embedding_size = 32

    # Deterministic "learnable" parameter (torch.randn equivalent, shape (1, 1, E)).
    class_token_vector = jax.random.normal(
        k_cls, (1, 1, embedding_size), dtype=jnp.float32
    )
    x = jax.random.normal(
        k_x, (batch_size, nbr_token, embedding_size), dtype=jnp.float32
    )

    out = class_token_prepender(x, class_token_vector)
    out = jax.block_until_ready(out)

    # Reference (plain JAX): expand class token over batch, concat on token dim.
    ref = jnp.concatenate(
        [jnp.broadcast_to(class_token_vector, (batch_size, 1, embedding_size)), x],
        axis=1,
    )
    assert out.shape == (batch_size, nbr_token + 1, embedding_size)
    assert jnp.allclose(out, ref), "mismatch vs reference"

    print("KERNEL_OK")
</pallas_src>

<mosaic_0001>
module attributes {stable_mosaic.version = 11 : i64} {
  func.func @_prepend_kernel(%arg0: i32, %arg1: memref<1x1x32xf32, #tpu.memory_space<vmem>>, %arg2: memref<2x8x32xf32, #tpu.memory_space<vmem>>, %arg3: memref<2x9x32xf32, #tpu.memory_space<vmem>>) attributes {dimension_semantics = [#tpu.dimension_semantics<parallel>], iteration_bounds = array<i64: 1>, scalar_prefetch = 0 : i64, scratch_operands = 0 : i64, tpu.core_type = #tpu.core_type<tc>, window_params = [{pipeline_mode = #tpu.pipeline_mode<synchronous>, transform_indices = @transform_0, window_bounds = array<i64: 1, 1, 32>}, {transform_indices = @transform_1, window_bounds = array<i64: 2, 8, 32>}, {transform_indices = @transform_2, window_bounds = array<i64: 2, 9, 32>}]} {
    %c0 = arith.constant 0 : index
    %c0_0 = arith.constant 0 : index
    %c0_1 = arith.constant 0 : index
    %0 = vector.load %arg1[%c0, %c0_0, %c0_1] : memref<1x1x32xf32, #tpu.memory_space<vmem>>, vector<1x1x32xf32>
    %1 = vector.shape_cast %0 : vector<1x1x32xf32> to vector<1x1x32xf32>
    %2 = vector.broadcast %1 : vector<1x1x32xf32> to vector<2x1x32xf32>
    %c0_2 = arith.constant 0 : index
    %c0_3 = arith.constant 0 : index
    %c0_4 = arith.constant 0 : index
    %3 = vector.load %arg3[%c0_2, %c0_3, %c0_4] : memref<2x9x32xf32, #tpu.memory_space<vmem>>, vector<2x1x32xf32>
    tpu.vector_store %arg3[%c0_2, %c0_3, %c0_4], %2 {strides = array<i32>} : memref<2x9x32xf32, #tpu.memory_space<vmem>>, vector<2x1x32xf32>,
    %c0_5 = arith.constant 0 : index
    %c0_6 = arith.constant 0 : index
    %c0_7 = arith.constant 0 : index
    %4 = vector.load %arg2[%c0_5, %c0_6, %c0_7] : memref<2x8x32xf32, #tpu.memory_space<vmem>>, vector<2x8x32xf32>
    %c0_8 = arith.constant 0 : index
    %c1 = arith.constant 1 : index
    %c0_9 = arith.constant 0 : index
    %5 = vector.load %arg3[%c0_8, %c1, %c0_9] : memref<2x9x32xf32, #tpu.memory_space<vmem>>, vector<2x8x32xf32>
    tpu.vector_store %arg3[%c0_8, %c1, %c0_9], %4 {strides = array<i32>} : memref<2x9x32xf32, #tpu.memory_space<vmem>>, vector<2x8x32xf32>,
    return
  }
  func.func @transform_0(%arg0: i32) -> (i32, i32, i32) {
    %c0_i32 = arith.constant 0 : i32
    %c0_i32_0 = arith.constant 0 : i32
    %c0_i32_1 = arith.constant 0 : i32
    %c0_i32_2 = arith.constant 0 : i32
    return %c0_i32, %c0_i32_0, %c0_i32_1 : i32, i32, i32
  }
  func.func @transform_1(%arg0: i32) -> (i32, i32, i32) {
    %c0_i32 = arith.constant 0 : i32
    %c0_i32_0 = arith.constant 0 : i32
    %c0_i32_1 = arith.constant 0 : i32
    return %arg0, %c0_i32, %c0_i32_0 : i32, i32, i32
  }
  func.func @transform_2(%arg0: i32) -> (i32, i32, i32) {
    %c0_i32 = arith.constant 0 : i32
    %c0_i32_0 = arith.constant 0 : i32
    %c0_i32_1 = arith.constant 0 : i32
    return %arg0, %c0_i32, %c0_i32_0 : i32, i32, i32
  }
}

</mosaic_0001>

<llo_original>
// kernel: tpu_custom_call.1
$region0: #{tpu_custom_call.1}
  #allocation0 [shape = 'u32[]', space=smem, size = 0x4, offset = 0x4, fixed_abs, tag = 'smem constant byte address 0x4 - core index']
  #allocation1 [shape = 'u32[72,128]{1,0:T(1,128)}', space=vmem, size = 0x9000, scoped, tag = 'internal scratch']
  %s0 = inlined_call_operand.hbm [shape: f32[1,1,32], index: 0, kind: input, shape index: {}]
  %s1 = inlined_call_operand.hbm [shape: f32[2,8,32], index: 1, kind: input, shape index: {}]
  %s2 = inlined_call_operand.vmem [shape: f32[2,9,32], index: 2, kind: output, shape index: {}]
  %s3 = sld [smem:[#allocation0]]
  $region26: #{tpu_custom_call.1} parent=0
    _
  %s5 = ssub.s32 1, %s3
  %s6 = scalar_select 0, %s5, %s3
  $region1: #{tpu_custom_call.1} parent=0
    #allocation2 [shape = 'u8[512]{0}', space=vmem, size = 0x400, scoped, tag = 'input window, operand 0, single buffered']
    #allocation3 [shape = 's32[1]{0}', space=sflag, size = 0x4, scoped, tag = 'scoped memory for tpu_custom_call.1']
    #allocation4 [shape = 'u8[8192]{0}', space=vmem, size = 0x2000, scoped, tag = 'input window, operand 1, single buffered']
    #allocation5 [shape = 's32[1]{0}', space=sflag, size = 0x4, scoped, tag = 'scoped memory for tpu_custom_call.1']
    %7 = vsyncpa [#allocation3], 0
    %8 = vsyncpa [#allocation5], 0
    // Predicated region
    $region2: #{tpu_custom_call.1} parent=1 // pred_check
      _
    $region3: #{tpu_custom_call.1} parent=1 // pred_check_branch
      %10 = sbr.rel (0) target = $region5
    $region4: #{tpu_custom_call.1} parent=1 // pred_region
      %12 = vsyncadd [#allocation3], 0
      %s14 = sshll.u32 %s0, 4
      %s15 = int_to_ptr.hbm [resolvable:$true] %s14
      %s16 = sshll.u32 [#allocation2], 4
      %s17 = int_to_ptr.vmem [resolvable:$true] %s16
      %19 = dma.hbm_to_vmem [thread:$0]  %s15, 16, %s17, [#allocation3]
    $region5: #{tpu_custom_call.1} parent=1 // pred_fallthru
      _
    // Predicated region
    $region6: #{tpu_custom_call.1} parent=1 // pred_check
      _
    $region7: #{tpu_custom_call.1} parent=1 // pred_check_branch
      %21 = sbr.rel (0) target = $region9
    $region8: #{tpu_custom_call.1} parent=1 // pred_region
      %23 = vsyncadd [#allocation5], 0
      %s24 = sshll.u32 %s1, 4
      %s25 = int_to_ptr.hbm [resolvable:$true] %s24
      %s26 = sshll.u32 [#allocation4], 4
      %s27 = int_to_ptr.vmem [resolvable:$true] %s26
      %32 = dma.hbm_to_vmem [thread:$0]  %s25, 256, %s27, [#allocation5], 128, 128, 8
    $region9: #{tpu_custom_call.1} parent=1 // pred_fallthru
      _
    // Predicated region
    $region10: #{tpu_custom_call.1} parent=1 // pred_check
      _
    $region11: #{tpu_custom_call.1} parent=1 // pred_check_branch
      %34 = sbr.rel (0) target = $region13
    $region12: #{tpu_custom_call.1} parent=1 // pred_region
      %36 = dma.done [#allocation3], 16
    $region13: #{tpu_custom_call.1} parent=1 // pred_fallthru
      _
    // Predicated region
    $region14: #{tpu_custom_call.1} parent=1 // pred_check
      _
    $region15: #{tpu_custom_call.1} parent=1 // pred_check_branch
      %38 = sbr.rel (0) target = $region17
    $region16: #{tpu_custom_call.1} parent=1 // pred_region
      %40 = dma.done [#allocation5], 256
    $region17: #{tpu_custom_call.1} parent=1 // pred_fallthru
      _
    %v41 = vld [vmem:[#allocation2] sm:$0x1]
    %vm42 = vcmask 253952
    %43 = vst.msk [vmem:[%s2] sm:$0x1] %vm42, %v41
    %44 = vst.msk [vmem:[%s2 + $0x10] sm:$0x1] %vm42, %v41
    %v45 = vld [vmem:[#allocation4] sm:$0xff]
    %v46 = vld [vmem:[#allocation4 + $0x8] sm:$0xff]
    %vm47 = vcmask 261120
    %48 = vst.msk [vmem:[%s2 + $0x1] sm:$0xff] %vm47, %v45
    %49 = vst.msk [vmem:[%s2 + $0x11] sm:$0xff] %vm47, %v46
    // Predicated region
    $region18: #{tpu_custom_call.1} parent=1 // pred_check
      _
    $region19: #{tpu_custom_call.1} parent=1 // pred_check_branch
      %51 = sbr.rel (0) target = $region21
    $region20: #{tpu_custom_call.1} parent=1 // pred_region
      _
    $region21: #{tpu_custom_call.1} parent=1 // pred_fallthru
      _
    // Predicated region
    $region22: #{tpu_custom_call.1} parent=1 // pred_check
      _
    $region23: #{tpu_custom_call.1} parent=1 // pred_check_branch
      %53 = sbr.rel (0) target = $region25
    $region24: #{tpu_custom_call.1} parent=1 // pred_region
      _
    $region25: #{tpu_custom_call.1} parent=1 // pred_fallthru
      _
    %54 = vsyncpa [#allocation3], 1
    %55 = vsyncpa [#allocation5], 1

</llo_original>
